<compile_context>
chip_gen: v6e
topology: v6e:2x2x1
jax: 0.10.0
libtpu: 0.0.40
codegen_flags: <defaults>
</compile_context>

<pallas_src>
import math

import jax
import jax.numpy as jnp
from jax.experimental import pallas as pl
from jax.experimental.pallas import tpu as pltpu


def _critic_kernel(x_ref, w1_ref, b1_ref, nt_ref, w2_ref, b2_ref, w3_ref, b3_ref,
                   v_ref):
    # fc1: (TB, S) @ (S, C) on the MXU (bf16 in, f32 accumulate) + bias + noise term.
    x = x_ref[...].astype(w1_ref.dtype)
    h1 = jnp.dot(x, w1_ref[...], preferred_element_type=jnp.float32)
    h1 = jnp.maximum(h1 + b1_ref[...] + nt_ref[...], 0.0)        # relu(fc1)
    # fc2: (TB, C) @ (C, C)
    h2 = jnp.dot(h1.astype(w2_ref.dtype), w2_ref[...],
                 preferred_element_type=jnp.float32) + b2_ref[...]
    h2 = jnp.maximum(h2, 0.0)                                    # relu(fc2)
    # fc3 (out_features == 1): VPU multiply + lane reduction instead of a 1-wide matmul.
    v = jnp.sum(h2 * w3_ref[...], axis=-1, keepdims=True) + b3_ref[...]
    v_ref[...] = v.astype(v_ref.dtype)


def _pick_batch_tile(batch, n_agents, cap=1024):
    """Batch tile: <=cap rows, multiple of lcm(8, n_agents) (or the full batch)."""
    if batch <= cap:
        return batch
    align = (8 * n_agents) // math.gcd(8, n_agents)
    return max(align, (cap // align) * align)


def critic_apply(inputs, noise_vector, params, *, use_value_noise, n_agents):
    """Critic.forward.  inputs: (batch, state_shape) -> v: (batch, 1) float32."""
    w1, b1, w2, b2, w3, b3 = params
    batch, state_shape = inputs.shape
    critic_dim = w1.shape[1]

    tb = _pick_batch_tile(batch, n_agents if use_value_noise else 1)

    if use_value_noise:
        assert batch % n_agents == 0, "batch must be a multiple of n_agents"
        assert tb % n_agents == 0
        # Fold the noise columns of fc1 into a tiny projection instead of writing a
        # (batch, state+noise) concat to HBM and reading it back.
        w1_state = w1[:state_shape]                 # (state_shape, C)
        w1_noise = w1[state_shape:]                 # (noise_dim,  C)
        noise_proj = jnp.dot(noise_vector.astype(w1.dtype), w1_noise,
                             preferred_element_type=jnp.float32)   # (n_agents, C)
        noise_tile = jnp.tile(noise_proj, (tb // n_agents, 1)).astype(jnp.float32)
    else:
        w1_state = w1
        noise_tile = jnp.zeros((tb, critic_dim), jnp.float32)

    w3_row = w3.reshape(1, critic_dim).astype(jnp.float32)        # (1, C) value head

    grid = (pl.cdiv(batch, tb),)

    def const(a):
        # Whole-array, grid-invariant block: resident in VMEM across all batch tiles.
        return pl.BlockSpec(a.shape, lambda i: (0,) * a.ndim)

    return pl.pallas_call(
        _critic_kernel,
        out_shape=jax.ShapeDtypeStruct((batch, 1), jnp.float32),
        grid=grid,
        in_specs=[
            pl.BlockSpec((tb, state_shape), lambda i: (i, 0)),    # x (batch-tiled)
            const(w1_state), const(b1), const(noise_tile),
            const(w2), const(b2), const(w3_row), const(b3),
        ],
        out_specs=pl.BlockSpec((tb, 1), lambda i: (i, 0)),
        compiler_params=pltpu.CompilerParams(
            dimension_semantics=("parallel",)),                   # 2 TCs on v7x
    )(inputs, w1_state, b1, noise_tile, w2, b2, w3_row, b3)


def make_params(key, input_shape, critic_dim, param_dtype=jnp.bfloat16):
    """nn.Linear-equivalent init.  W stored (in, out) (transpose of torch's (out, in));
    fc1/fc2 weights cast once to param_dtype (bf16), biases and fc3 kept f32."""
    ks = jax.random.split(key, 6)

    def linear(kw, kb, fan_in, fan_out, w_dtype):
        bound = 1.0 / math.sqrt(fan_in)
        w = jax.random.uniform(kw, (fan_in, fan_out), jnp.float32, -bound, bound)
        b = jax.random.uniform(kb, (1, fan_out), jnp.float32, -bound, bound)
        return w.astype(w_dtype), b

    w1, b1 = linear(ks[0], ks[1], input_shape, critic_dim, param_dtype)
    w2, b2 = linear(ks[2], ks[3], critic_dim, critic_dim, param_dtype)
    w3, b3 = linear(ks[4], ks[5], critic_dim, 1, jnp.float32)
    return (w1, b1, w2, b2, w3, b3)


if __name__ == "__main__":
    # Small deterministic example: n_agents=2, batch=8, state_shape=24, noise_dim=8,
    # critic_dim=32, use_value_noise=True  =>  fc1 input_shape = 24 + 8 = 32.
    n_agents = 2
    batch = 8
    state_shape = 24
    noise_dim = 8
    critic_dim = 32
    use_value_noise = True
    input_shape = state_shape + (noise_dim if use_value_noise else 0)

    key = jax.random.PRNGKey(0)
    k_state, k_noise, k_params = jax.random.split(key, 3)

    state = jax.random.normal(k_state, (batch, state_shape), jnp.float32)
    noise_vector = jax.random.normal(k_noise, (n_agents, noise_dim), jnp.float32)
    params = make_params(k_params, input_shape, critic_dim)

    v = critic_apply(state, noise_vector, params,
                     use_value_noise=use_value_noise, n_agents=n_agents)
    v = jax.block_until_ready(v)

    # Plain-JAX reference with the same (bf16) weights, mirroring torch's
    # concat-then-MLP formulation of Critic.forward.
    w1, b1, w2, b2, w3, b3 = params
    x_full = jnp.concatenate(
        (state, jnp.tile(noise_vector, (batch // n_agents, 1))), axis=-1)
    h = jnp.maximum(jnp.dot(x_full.astype(w1.dtype), w1,
                            preferred_element_type=jnp.float32) + b1, 0.0)
    h = jnp.maximum(jnp.dot(h.astype(w2.dtype), w2,
                            preferred_element_type=jnp.float32) + b2, 0.0)
    v_ref = jnp.dot(h, w3, preferred_element_type=jnp.float32) + b3

    assert v.shape == (batch, 1)
    err = float(jnp.max(jnp.abs(v - v_ref)))
    assert jnp.allclose(v, v_ref, atol=2e-3, rtol=2e-3), err
    print("KERNEL_OK")
</pallas_src>

<mosaic_0001>
module attributes {stable_mosaic.version = 11 : i64} {
  func.func @_critic_kernel(%arg0: i32, %arg1: memref<8x24xf32, #tpu.memory_space<vmem>>, %arg2: memref<24x32xbf16, #tpu.memory_space<vmem>>, %arg3: memref<1x32xf32, #tpu.memory_space<vmem>>, %arg4: memref<8x32xf32, #tpu.memory_space<vmem>>, %arg5: memref<32x32xbf16, #tpu.memory_space<vmem>>, %arg6: memref<1x32xf32, #tpu.memory_space<vmem>>, %arg7: memref<1x32xf32, #tpu.memory_space<vmem>>, %arg8: memref<1x1xf32, #tpu.memory_space<vmem>>, %arg9: memref<8x1xf32, #tpu.memory_space<vmem>>) attributes {dimension_semantics = [#tpu.dimension_semantics<parallel>], iteration_bounds = array<i64: 1>, scalar_prefetch = 0 : i64, scratch_operands = 0 : i64, tpu.core_type = #tpu.core_type<tc>, window_params = [{transform_indices = @transform_0, window_bounds = array<i64: 8, 24>}, {pipeline_mode = #tpu.pipeline_mode<synchronous>, transform_indices = @transform_1, window_bounds = array<i64: 24, 32>}, {pipeline_mode = #tpu.pipeline_mode<synchronous>, transform_indices = @transform_2, window_bounds = array<i64: 1, 32>}, {pipeline_mode = #tpu.pipeline_mode<synchronous>, transform_indices = @transform_3, window_bounds = array<i64: 8, 32>}, {pipeline_mode = #tpu.pipeline_mode<synchronous>, transform_indices = @transform_4, window_bounds = array<i64: 32, 32>}, {pipeline_mode = #tpu.pipeline_mode<synchronous>, transform_indices = @transform_5, window_bounds = array<i64: 1, 32>}, {pipeline_mode = #tpu.pipeline_mode<synchronous>, transform_indices = @transform_6, window_bounds = array<i64: 1, 32>}, {pipeline_mode = #tpu.pipeline_mode<synchronous>, transform_indices = @transform_7, window_bounds = array<i64: 1, 1>}, {transform_indices = @transform_8, window_bounds = array<i64: 8, 1>}]} {
    %c0 = arith.constant 0 : index
    %c0_0 = arith.constant 0 : index
    %0 = vector.load %arg1[%c0, %c0_0] : memref<8x24xf32, #tpu.memory_space<vmem>>, vector<8x24xf32>
    %1 = arith.truncf %0 : vector<8x24xf32> to vector<8x24xbf16>
    %c0_1 = arith.constant 0 : index
    %c0_2 = arith.constant 0 : index
    %2 = vector.load %arg2[%c0_1, %c0_2] : memref<24x32xbf16, #tpu.memory_space<vmem>>, vector<24x32xbf16>
    %cst = arith.constant dense<0.000000e+00> : vector<8x32xf32>
    %3 = tpu.matmul %1, %2, %cst {dimension_numbers = #tpu.dot_dimension_numbers<[1], [0], [0], [1], [0, 0, 1, 1], [], []>} : vector<8x24xbf16>, vector<24x32xbf16>, vector<8x32xf32> -> vector<8x32xf32>
    %c0_3 = arith.constant 0 : index
    %c0_4 = arith.constant 0 : index
    %4 = vector.load %arg3[%c0_3, %c0_4] : memref<1x32xf32, #tpu.memory_space<vmem>>, vector<1x32xf32>
    %5 = vector.broadcast %4 : vector<1x32xf32> to vector<8x32xf32>
    %6 = arith.addf %3, %5 : vector<8x32xf32>
    %c0_5 = arith.constant 0 : index
    %c0_6 = arith.constant 0 : index
    %7 = vector.load %arg4[%c0_5, %c0_6] : memref<8x32xf32, #tpu.memory_space<vmem>>, vector<8x32xf32>
    %8 = arith.addf %6, %7 : vector<8x32xf32>
    %cst_7 = arith.constant 0.000000e+00 : f32
    %9 = vector.broadcast %cst_7 : f32 to vector<8x32xf32>
    %10 = arith.maximumf %8, %9 : vector<8x32xf32>
    %11 = arith.truncf %10 : vector<8x32xf32> to vector<8x32xbf16>
    %c0_8 = arith.constant 0 : index
    %c0_9 = arith.constant 0 : index
    %12 = vector.load %arg5[%c0_8, %c0_9] : memref<32x32xbf16, #tpu.memory_space<vmem>>, vector<32x32xbf16>
    %cst_10 = arith.constant dense<0.000000e+00> : vector<8x32xf32>
    %13 = tpu.matmul %11, %12, %cst_10 {dimension_numbers = #tpu.dot_dimension_numbers<[1], [0], [0], [1], [0, 0, 1, 1], [], []>} : vector<8x32xbf16>, vector<32x32xbf16>, vector<8x32xf32> -> vector<8x32xf32>
    %c0_11 = arith.constant 0 : index
    %c0_12 = arith.constant 0 : index
    %14 = vector.load %arg6[%c0_11, %c0_12] : memref<1x32xf32, #tpu.memory_space<vmem>>, vector<1x32xf32>
    %15 = vector.broadcast %14 : vector<1x32xf32> to vector<8x32xf32>
    %16 = arith.addf %13, %15 : vector<8x32xf32>
    %cst_13 = arith.constant 0.000000e+00 : f32
    %17 = vector.broadcast %cst_13 : f32 to vector<8x32xf32>
    %18 = arith.maximumf %16, %17 : vector<8x32xf32>
    %c0_14 = arith.constant 0 : index
    %c0_15 = arith.constant 0 : index
    %19 = vector.load %arg7[%c0_14, %c0_15] : memref<1x32xf32, #tpu.memory_space<vmem>>, vector<1x32xf32>
    %20 = vector.broadcast %19 : vector<1x32xf32> to vector<8x32xf32>
    %21 = arith.mulf %18, %20 : vector<8x32xf32>
    %cst_16 = arith.constant dense<0.000000e+00> : vector<8xf32>
    %22 = vector.multi_reduction <add>, %21, %cst_16 [1] : vector<8x32xf32> to vector<8xf32>
    %23 = vector.shape_cast %22 : vector<8xf32> to vector<8x1xf32>
    %c0_17 = arith.constant 0 : index
    %c0_18 = arith.constant 0 : index
    %24 = vector.load %arg8[%c0_17, %c0_18] : memref<1x1xf32, #tpu.memory_space<vmem>>, vector<1x1xf32>
    %25 = vector.broadcast %24 : vector<1x1xf32> to vector<8x1xf32>
    %26 = arith.addf %23, %25 : vector<8x1xf32>
    %c0_19 = arith.constant 0 : index
    %c0_20 = arith.constant 0 : index
    %27 = vector.load %arg9[%c0_19, %c0_20] : memref<8x1xf32, #tpu.memory_space<vmem>>, vector<8x1xf32>
    tpu.vector_store %arg9[%c0_19, %c0_20], %26 {strides = array<i32>} : memref<8x1xf32, #tpu.memory_space<vmem>>, vector<8x1xf32>,
    return
  }
  func.func @transform_0(%arg0: i32) -> (i32, i32) {
    %c0_i32 = arith.constant 0 : i32
    %c0_i32_0 = arith.constant 0 : i32
    return %arg0, %c0_i32 : i32, i32
  }
  func.func @transform_1(%arg0: i32) -> (i32, i32) {
    %c0_i32 = arith.constant 0 : i32
    %c0_i32_0 = arith.constant 0 : i32
    %c0_i32_1 = arith.constant 0 : i32
    return %c0_i32, %c0_i32_0 : i32, i32
  }
  func.func @transform_2(%arg0: i32) -> (i32, i32) {
    %c0_i32 = arith.constant 0 : i32
    %c0_i32_0 = arith.constant 0 : i32
    %c0_i32_1 = arith.constant 0 : i32
    return %c0_i32, %c0_i32_0 : i32, i32
  }
  func.func @transform_3(%arg0: i32) -> (i32, i32) {
    %c0_i32 = arith.constant 0 : i32
    %c0_i32_0 = arith.constant 0 : i32
    %c0_i32_1 = arith.constant 0 : i32
    return %c0_i32, %c0_i32_0 : i32, i32
  }
  func.func @transform_4(%arg0: i32) -> (i32, i32) {
    %c0_i32 = arith.constant 0 : i32
    %c0_i32_0 = arith.constant 0 : i32
    %c0_i32_1 = arith.constant 0 : i32
    return %c0_i32, %c0_i32_0 : i32, i32
  }
  func.func @transform_5(%arg0: i32) -> (i32, i32) {
    %c0_i32 = arith.constant 0 : i32
    %c0_i32_0 = arith.constant 0 : i32
    %c0_i32_1 = arith.constant 0 : i32
    return %c0_i32, %c0_i32_0 : i32, i32
  }
  func.func @transform_6(%arg0: i32) -> (i32, i32) {
    %c0_i32 = arith.constant 0 : i32
    %c0_i32_0 = arith.constant 0 : i32
    %c0_i32_1 = arith.constant 0 : i32
    return %c0_i32, %c0_i32_0 : i32, i32
  }
  func.func @transform_7(%arg0: i32) -> (i32, i32) {
    %c0_i32 = arith.constant 0 : i32
    %c0_i32_0 = arith.constant 0 : i32
    %c0_i32_1 = arith.constant 0 : i32
    return %c0_i32, %c0_i32_0 : i32, i32
  }
  func.func @transform_8(%arg0: i32) -> (i32, i32) {
    %c0_i32 = arith.constant 0 : i32
    %c0_i32_0 = arith.constant 0 : i32
    return %arg0, %c0_i32 : i32, i32
  }
}

</mosaic_0001>

<llo_original>
// kernel: tpu_custom_call.1
$region0: #{tpu_custom_call.1}
  #allocation0 [shape = 'u32[]', space=smem, size = 0x4, offset = 0x4, fixed_abs, tag = 'smem constant byte address 0x4 - core index']
  #allocation1 [shape = 'u32[144,128]{1,0:T(1,128)}', space=vmem, size = 0x12000, scoped, tag = 'internal scratch']
  #allocation2 [shape = 'f32[1,1]{1,0:T(1,128)S(1)}', space=vmem, size = 0x200, scoped, tag = 'scoped memory for tpu_custom_call.1']
  %s0 = inlined_call_operand.hbm [shape: f32[8,24], index: 0, kind: input, shape index: {}]
  %s1 = inlined_call_operand.hbm [shape: bf16[24,32], index: 1, kind: input, shape index: {}]
  %s2 = inlined_call_operand.vmem [shape: f32[1,32], index: 2, kind: input, shape index: {}]
  %s3 = inlined_call_operand.hbm [shape: f32[8,32], index: 3, kind: input, shape index: {}]
  %s4 = inlined_call_operand.hbm [shape: bf16[32,32], index: 4, kind: input, shape index: {}]
  %s5 = inlined_call_operand.vmem [shape: f32[1,32], index: 5, kind: input, shape index: {}]
  %s6 = inlined_call_operand.vmem [shape: f32[1,32], index: 6, kind: input, shape index: {}]
  %s7 = inlined_call_operand.<no memory space> [shape: f32[1,1], index: 7, kind: input, shape index: {}]
  %s8 = inlined_call_operand.vmem [shape: f32[8,1], index: 8, kind: output, shape index: {}]
  %s9 = sld [smem:[#allocation0]]
  $region58: #{tpu_custom_call.1} parent=0
    _
  %s11 = ssub.s32 1, %s9
  %s12 = scalar_select 0, %s11, %s9
  %v13 = vstv %s7
  %14 = vst [vmem:[#allocation2] sm:$0x1] %v13
  $region1: #{tpu_custom_call.1} parent=0
    #allocation3 [shape = 'u8[4096]{0}', space=vmem, size = 0x1000, scoped, tag = 'input window, operand 0, single buffered']
    #allocation4 [shape = 's32[1]{0}', space=sflag, size = 0x4, scoped, tag = 'scoped memory for tpu_custom_call.1']
    #allocation5 [shape = 'u8[6144]{0}', space=vmem, size = 0x1800, scoped, tag = 'input window, operand 1, single buffered']
    #allocation6 [shape = 's32[1]{0}', space=sflag, size = 0x4, scoped, tag = 'scoped memory for tpu_custom_call.1']
    #allocation7 [shape = 'u8[4096]{0}', space=vmem, size = 0x1000, scoped, tag = 'input window, operand 3, single buffered']
    #allocation8 [shape = 'u8[8192]{0}', space=vmem, size = 0x2000, scoped, tag = 'input window, operand 4, single buffered']
    #allocation9 [shape = 's32[1]{0}', space=sflag, size = 0x4, scoped, tag = 'scoped memory for tpu_custom_call.1']
    %15 = vsyncpa [#allocation4], 0
    %16 = vsyncpa [#allocation6], 0
    %17 = vsyncpa [#allocation9], 0
    // Predicated region
    $region2: #{tpu_custom_call.1} parent=1 // pred_check
      _
    $region3: #{tpu_custom_call.1} parent=1 // pred_check_branch
      %19 = sbr.rel (0) target = $region5
    $region4: #{tpu_custom_call.1} parent=1 // pred_region
      %s21 = ssub.s32 128, 128
      %22 = vsyncadd [#allocation4], %s21
      %s24 = sshll.u32 [#allocation3], 4
      %s25 = int_to_ptr.vmem [resolvable:$true] %s24
      %27 = dma.hbm_to_vmem [thread:$0]  %s0, 128, %s25, [#allocation4]
    $region5: #{tpu_custom_call.1} parent=1 // pred_fallthru
      _
    // Predicated region
    $region6: #{tpu_custom_call.1} parent=1 // pred_check
      _
    $region7: #{tpu_custom_call.1} parent=1 // pred_check_branch
      %29 = sbr.rel (0) target = $region9
    $region8: #{tpu_custom_call.1} parent=1 // pred_region
      %s31 = ssub.s32 192, 192
      %32 = vsyncadd [#allocation6], %s31
      %s33 = sshll.u32 [#allocation5], 4
      %s34 = int_to_ptr.vmem [resolvable:$true] %s33
      %39 = dma.hbm_to_vmem [thread:$0]  %s1, 192, %s34, [#allocation6], 64, 64, 4
    $region9: #{tpu_custom_call.1} parent=1 // pred_fallthru
      _
    // Predicated region
    $region10: #{tpu_custom_call.1} parent=1 // pred_check
      _
    $region11: #{tpu_custom_call.1} parent=1 // pred_check_branch
      %41 = sbr.rel (0) target = $region13
    $region12: #{tpu_custom_call.1} parent=1 // pred_region
      _
    $region13: #{tpu_custom_call.1} parent=1 // pred_fallthru
      _
    // Predicated region
    $region14: #{tpu_custom_call.1} parent=1 // pred_check
      _
    $region15: #{tpu_custom_call.1} parent=1 // pred_check_branch
      %43 = sbr.rel (0) target = $region17
    $region16: #{tpu_custom_call.1} parent=1 // pred_region
      %s45 = ssub.s32 128, 128
      %46 = vsyncadd [#allocation6], %s45
      %s48 = sshll.u32 [#allocation7], 4
      %s49 = int_to_ptr.vmem [resolvable:$true] %s48
      %51 = dma.hbm_to_vmem [thread:$0]  %s3, 128, %s49, [#allocation6]
    $region17: #{tpu_custom_call.1} parent=1 // pred_fallthru
      _
    // Predicated region
    $region18: #{tpu_custom_call.1} parent=1 // pred_check
      _
    $region19: #{tpu_custom_call.1} parent=1 // pred_check_branch
      %53 = sbr.rel (0) target = $region21
    $region20: #{tpu_custom_call.1} parent=1 // pred_region
      %s55 = ssub.s32 256, 256
      %56 = vsyncadd [#allocation9], %s55
      %s57 = sshll.u32 [#allocation8], 4
      %s58 = int_to_ptr.vmem [resolvable:$true] %s57
      %63 = dma.hbm_to_vmem [thread:$0]  %s4, 256, %s58, [#allocation9], 64, 64, 4
    $region21: #{tpu_custom_call.1} parent=1 // pred_fallthru
      _
    // Predicated region
    $region22: #{tpu_custom_call.1} parent=1 // pred_check
      _
    $region23: #{tpu_custom_call.1} parent=1 // pred_check_branch
      %65 = sbr.rel (0) target = $region25
    $region24: #{tpu_custom_call.1} parent=1 // pred_region
      _
    $region25: #{tpu_custom_call.1} parent=1 // pred_fallthru
      _
    // Predicated region
    $region26: #{tpu_custom_call.1} parent=1 // pred_check
      _
    $region27: #{tpu_custom_call.1} parent=1 // pred_check_branch
      %67 = sbr.rel (0) target = $region29
    $region28: #{tpu_custom_call.1} parent=1 // pred_region
      _
    $region29: #{tpu_custom_call.1} parent=1 // pred_fallthru
      _
    // Predicated region
    $region30: #{tpu_custom_call.1} parent=1 // pred_check
      _
    $region31: #{tpu_custom_call.1} parent=1 // pred_check_branch
      %69 = sbr.rel (0) target = $region33
    $region32: #{tpu_custom_call.1} parent=1 // pred_region
      _
    $region33: #{tpu_custom_call.1} parent=1 // pred_fallthru
      _
    // Predicated region
    $region34: #{tpu_custom_call.1} parent=1 // pred_check
      _
    $region35: #{tpu_custom_call.1} parent=1 // pred_check_branch
      %71 = sbr.rel (0) target = $region37
    $region36: #{tpu_custom_call.1} parent=1 // pred_region
      %72 = dma.done [#allocation4], 128
    $region37: #{tpu_custom_call.1} parent=1 // pred_fallthru
      _
    // Predicated region
    $region38: #{tpu_custom_call.1} parent=1 // pred_check
      _
    $region39: #{tpu_custom_call.1} parent=1 // pred_check_branch
      %74 = sbr.rel (0) target = $region41
    $region40: #{tpu_custom_call.1} parent=1 // pred_region
      %75 = dma.done [#allocation6], 192
    $region41: #{tpu_custom_call.1} parent=1 // pred_fallthru
      _
    // Predicated region
    $region42: #{tpu_custom_call.1} parent=1 // pred_check
      _
    $region43: #{tpu_custom_call.1} parent=1 // pred_check_branch
      %77 = sbr.rel (0) target = $region45
    $region44: #{tpu_custom_call.1} parent=1 // pred_region
      %78 = dma.done [#allocation6], 128
    $region45: #{tpu_custom_call.1} parent=1 // pred_fallthru
      _
    // Predicated region
    $region46: #{tpu_custom_call.1} parent=1 // pred_check
      _
    $region47: #{tpu_custom_call.1} parent=1 // pred_check_branch
      %80 = sbr.rel (0) target = $region49
    $region48: #{tpu_custom_call.1} parent=1 // pred_region
      %81 = dma.done [#allocation9], 256
    $region49: #{tpu_custom_call.1} parent=1 // pred_fallthru
      _
    %v83 = vld [vmem:[#allocation3] sm:$0xff]
    %v84 = vpack.c.bf16 %v83, %v83
    %v85 = vld [vmem:[#allocation5] sm:$0xf]
    %v86 = vld [vmem:[#allocation5 + $0x4] sm:$0xf]
    %v87 = vld [vmem:[#allocation5 + $0x8] sm:$0xf]
    %v88 = vld [vmem:[%s2] sm:$0x1]
    %v90 = vlaneseq
    %v91 = vshrl.u32 %v90, 7
    %v92 = vsub.s32 0, %v91
    %v93 = vrot.slane %v88, %v92
    %v98 = vunpack.c.l.b16 %v85
    %v99 = vunpack.c.l.b16 %v86
    %v100 = vunpack.c.l.b16 %v87
    %v101 = vpack.c.b16 %v99, %v98
    %v102 = vpack.c.b16 %v100, %v100
    %vm104 = vcmask 195584
    %v106 = vsel %vm104, %v84, 0
    %vm108 = vcmask 1043456
    %v110 = vsel %vm108, %v102, 0
    %112 = vmatprep.subr.bf16.mxu0 0
    %113 = vmatpush1.bf16.msra.mxu0 0
    %114 = vmatprep.subr.bf16.mxu0 0
    %115 = vmatpush1.bf16.msra.mxu0 0
    %116 = vmatprep.subr.bf16.mxu0 0
    %117 = vmatpush1.bf16.msra.mxu0 0
    %118 = vmatprep.subr.bf16.mxu0 0
    %119 = vmatpush1.bf16.msra.mxu0 0
    %120 = vmatprep.subr.bf16.mxu0 0
    %121 = vmatpush1.bf16.msra.mxu0 0
    %122 = vmatprep.subr.bf16.mxu0 0
    %123 = vmatpush1.bf16.msra.mxu0 0
    %124 = vmatprep.subr.bf16.mxu0 0
    %125 = vmatpush1.bf16.msra.mxu0 %v110
    %126 = vmatprep.subr.bf16.mxu0 0
    %127 = vmatpush1.bf16.msra.mxu0 %v101
    %128 = vmatprep.subr.bf16.mxu0 0
    %129 = vmatpush2.bf16.msra.mxu0 0
    %130 = vmatprep.subr.bf16.mxu0 0
    %131 = vmatpush2.bf16.msra.mxu0 0
    %132 = vmatprep.subr.bf16.mxu0 0
    %133 = vmatpush2.bf16.msra.mxu0 0
    %134 = vmatprep.subr.bf16.mxu0 0
    %135 = vmatpush2.bf16.msra.mxu0 0
    %136 = vmatprep.subr.bf16.mxu0 0
    %137 = vmatpush2.bf16.msra.mxu0 0
    %138 = vmatprep.subr.bf16.mxu0 0
    %139 = vmatpush2.bf16.msra.mxu0 0
    %140 = vmatprep.subr.bf16.mxu0 0
    %141 = vmatpush2.bf16.msra.mxu0 0
    %142 = vmatprep.subr.bf16.mxu0 0
    %143 = vmatpush2.bf16.msra.mxu0 0
    %144 = vmatprep.mubr.bf16.mxu0 0
    %145 = vmatmul.mubr.bf16.gmra.mxu0 %v106
    %v146 = vpop.f32.mrf.mxu0
    %v147 = vadd.f32 %v93, %v146
    %v148 = vpop.f32.mrf.mxu0
    %v149 = vpop.f32.mrf.mxu0
    %v150 = vpop.f32.mrf.mxu0
    %151 = vdwg.mxu0
    %v152 = vld [vmem:[#allocation7] sm:$0xff]
    %v153 = vadd.f32 %v147, %v152
    %v154 = vmax.f32 %v153, 0.0
    %v155 = vpack.c.bf16 %v154, %v154
    %v156 = vld [vmem:[#allocation8] sm:$0xf]
    %v157 = vld [vmem:[#allocation8 + $0x4] sm:$0xf]
    %v158 = vld [vmem:[#allocation8 + $0x8] sm:$0xf]
    %v159 = vld [vmem:[#allocation8 + $0xc] sm:$0xf]
    %v160 = vld [vmem:[%s5] sm:$0x1]
    %v162 = vlaneseq
    %v163 = vshrl.u32 %v162, 7
    %v164 = vsub.s32 0, %v163
    %v165 = vrot.slane %v160, %v164
    %v171 = vunpack.c.l.b16 %v156
    %v172 = vunpack.c.l.b16 %v157
    %v173 = vunpack.c.l.b16 %v158
    %v174 = vunpack.c.l.b16 %v159
    %v175 = vpack.c.b16 %v172, %v171
    %v176 = vpack.c.b16 %v174, %v173
    %vm179 = vcmask 261120
    %v181 = vsel %vm179, %v155, 0
    %183 = vmatprep.subr.bf16.mxu0 0
    %184 = vmatpush1.bf16.msra.mxu0 0
    %185 = vmatprep.subr.bf16.mxu0 0
    %186 = vmatpush1.bf16.msra.mxu0 0
    %187 = vmatprep.subr.bf16.mxu0 0
    %188 = vmatpush1.bf16.msra.mxu0 0
    %189 = vmatprep.subr.bf16.mxu0 0
    %190 = vmatpush1.bf16.msra.mxu0 0
    %191 = vmatprep.subr.bf16.mxu0 0
    %192 = vmatpush1.bf16.msra.mxu0 0
    %193 = vmatprep.subr.bf16.mxu0 0
    %194 = vmatpush1.bf16.msra.mxu0 0
    %195 = vmatprep.subr.bf16.mxu0 0
    %196 = vmatpush1.bf16.msra.mxu0 %v176
    %197 = vmatprep.subr.bf16.mxu0 0
    %198 = vmatpush1.bf16.msra.mxu0 %v175
    %199 = vmatprep.subr.bf16.mxu0 0
    %200 = vmatpush2.bf16.msra.mxu0 0
    %201 = vmatprep.subr.bf16.mxu0 0
    %202 = vmatpush2.bf16.msra.mxu0 0
    %203 = vmatprep.subr.bf16.mxu0 0
    %204 = vmatpush2.bf16.msra.mxu0 0
    %205 = vmatprep.subr.bf16.mxu0 0
    %206 = vmatpush2.bf16.msra.mxu0 0
    %207 = vmatprep.subr.bf16.mxu0 0
    %208 = vmatpush2.bf16.msra.mxu0 0
    %209 = vmatprep.subr.bf16.mxu0 0
    %210 = vmatpush2.bf16.msra.mxu0 0
    %211 = vmatprep.subr.bf16.mxu0 0
    %212 = vmatpush2.bf16.msra.mxu0 0
    %213 = vmatprep.subr.bf16.mxu0 0
    %214 = vmatpush2.bf16.msra.mxu0 0
    %215 = vmatprep.mubr.bf16.mxu0 0
    %216 = vmatmul.mubr.bf16.gmra.mxu0 %v181
    %v217 = vpop.f32.mrf.mxu0
    %v218 = vadd.f32 %v165, %v217
    %v219 = vpop.f32.mrf.mxu0
    %v220 = vpop.f32.mrf.mxu0
    %v221 = vpop.f32.mrf.mxu0
    %222 = vdwg.mxu0
    %v223 = vmax.f32 %v218, 0.0
    %v224 = vld [vmem:[%s6] sm:$0x1]
    %v226 = vlaneseq
    %v227 = vshrl.u32 %v226, 7
    %v228 = vsub.s32 0, %v227
    %v229 = vrot.slane %v224, %v228
    %v231 = vmul.f32 %v223, %v229
    %v232 = vsel %vm179, %v231, 0.0
    %233 = vadd.xlane.f32.xlu0 %v232
    %v234 = vpop.xlane.xlu0 %233
    %v235 = vld [vmem:[#allocation2] sm:$0x1]
    %v237 = vlaneseq
    %v238 = vshrl.u32 %v237, 7
    %v239 = vsub.s32 0, %v238
    %v240 = vrot.slane %v235, %v239
    %v242 = vadd.f32 %v234, %v240
    %vm243 = vcmask 7168
    %244 = vst.msk [vmem:[%s8] sm:$0xff] %vm243, %v242
    // Predicated region
    $region50: #{tpu_custom_call.1} parent=1 // pred_check
      _
    $region51: #{tpu_custom_call.1} parent=1 // pred_check_branch
      %246 = sbr.rel (0) target = $region53
    $region52: #{tpu_custom_call.1} parent=1 // pred_region
      _
    $region53: #{tpu_custom_call.1} parent=1 // pred_fallthru
      _
    // Predicated region
    $region54: #{tpu_custom_call.1} parent=1 // pred_check
      _
    $region55: #{tpu_custom_call.1} parent=1 // pred_check_branch
      %248 = sbr.rel (0) target = $region57
    $region56: #{tpu_custom_call.1} parent=1 // pred_region
      _
    $region57: #{tpu_custom_call.1} parent=1 // pred_fallthru
      _
    %249 = vsyncpa [#allocation4], 1
    %250 = vsyncpa [#allocation6], 1
    %251 = vsyncpa [#allocation9], 1

</llo_original>
